<compile_context>
chip_gen: v6e
topology: v6e:2x2x1
jax: 0.10.0
libtpu: 0.0.40
codegen_flags: <defaults>
</compile_context>

<pallas_src>
import functools

import jax
import jax.numpy as jnp
import numpy as np
from jax.experimental import pallas as pl
from jax.experimental.pallas import tpu as pltpu


def _mlp_disc_kernel(s1_ref, s2_ref,
                     w1f_ref, b1f_ref,
                     fw2_ref, fb2_ref, bw2_ref, bb2_ref,
                     fwo_ref, fbo_ref, bwo_ref, bbo_ref,
                     out_ref):
    s1 = s1_ref[...].astype(jnp.float32)
    s2 = s2_ref[...].astype(jnp.float32)

    diff = s1 - s2
    prod = s1 * s2
    adiff = jnp.abs(diff)

    E = s1.shape[-1]
    H = fw2_ref.shape[0]

    def w1_block(k):
        # Static [E, 2H] row-block slice of the fused layer-1 weight (bf16 -> f32).
        return w1f_ref[k * E:(k + 1) * E, :].astype(jnp.float32)

    # Fused layer 1: fwd half in columns [:H], permuted-bwd half in columns [H:].
    # Accumulate five K=E matmuls instead of materializing a [B, 5E] concat slab;
    # bias is folded into the accumulation.
    h12 = (jnp.dot(s1, w1_block(0), preferred_element_type=jnp.float32)
           + jnp.dot(s2, w1_block(1), preferred_element_type=jnp.float32)
           + jnp.dot(diff, w1_block(2), preferred_element_type=jnp.float32)
           + jnp.dot(prod, w1_block(3), preferred_element_type=jnp.float32)
           + jnp.dot(adiff, w1_block(4), preferred_element_type=jnp.float32)
           + b1f_ref[...].astype(jnp.float32))
    h12 = jnp.maximum(h12, 0.0)                      # ReLU (dropout = identity)

    h_f = h12[:, :H]
    h_b = h12[:, H:]

    # Layer 2 (per direction; weights stay separate to keep HBM bytes minimal).
    h_f = jnp.maximum(
        jnp.dot(h_f, fw2_ref[...].astype(jnp.float32),
                preferred_element_type=jnp.float32)
        + fb2_ref[...].astype(jnp.float32), 0.0)
    h_b = jnp.maximum(
        jnp.dot(h_b, bw2_ref[...].astype(jnp.float32),
                preferred_element_type=jnp.float32)
        + bb2_ref[...].astype(jnp.float32), 0.0)

    # Output heads (N=1): VPU multiply + lane reduce instead of a 1-lane matmul.
    o_f = (jnp.sum(h_f * fwo_ref[...].astype(jnp.float32), axis=-1, keepdims=True)
           + fbo_ref[...].astype(jnp.float32))
    o_b = (jnp.sum(h_b * bwo_ref[...].astype(jnp.float32), axis=-1, keepdims=True)
           + bbo_ref[...].astype(jnp.float32))

    score = (jax.nn.sigmoid(o_f) + jax.nn.sigmoid(o_b)) * 0.5
    out_ref[...] = score.astype(out_ref.dtype)


def _round_up(x, m):
    return ((x + m - 1) // m) * m


@functools.partial(jax.jit, static_argnames=("batch_tile",))
def mlp_discriminator(s1, s2, fused_params, *, batch_tile=256):
    B, E = s1.shape
    w1f = fused_params[0]
    H2 = w1f.shape[1]
    H = H2 // 2

    # Batch tile: multiple of 8 (sublane), capped at batch_tile; pad B if ragged.
    TB = min(batch_tile, _round_up(B, 8))
    Bp = _round_up(B, TB)
    if Bp != B:
        pad = Bp - B
        s1 = jnp.pad(s1, ((0, pad), (0, 0)))
        s2 = jnp.pad(s2, ((0, pad), (0, 0)))

    batched = lambda i: (i, 0)     # tiled along batch
    pinned = lambda i: (0, 0)      # same block every step -> stays resident in VMEM

    in_specs = [
        pl.BlockSpec((TB, E), batched),        # s1
        pl.BlockSpec((TB, E), batched),        # s2
        pl.BlockSpec((5 * E, H2), pinned),     # fused layer-1 weight [5E, 2H] bf16
        pl.BlockSpec((1, H2), pinned),         # fused layer-1 bias   [1, 2H]  f32
        pl.BlockSpec((H, H), pinned),          # fw2 bf16
        pl.BlockSpec((1, H), pinned),          # fb2 f32
        pl.BlockSpec((H, H), pinned),          # bw2 bf16
        pl.BlockSpec((1, H), pinned),          # bb2 f32
        pl.BlockSpec((1, H), pinned),          # fwo row bf16
        pl.BlockSpec((1, 1), pinned),          # fbo f32
        pl.BlockSpec((1, H), pinned),          # bwo row bf16
        pl.BlockSpec((1, 1), pinned),          # bbo f32
    ]
    out_spec = pl.BlockSpec((TB, 1), batched)

    out = pl.pallas_call(
        _mlp_disc_kernel,
        out_shape=jax.ShapeDtypeStruct((Bp, 1), jnp.float32),
        grid=(Bp // TB,),
        in_specs=in_specs,
        out_specs=out_spec,
        compiler_params=pltpu.CompilerParams(
            dimension_semantics=("parallel",),
        ),
    )(s1, s2, *fused_params)
    return out[:B]


# ----------------------------------------------------------------------------
# Parameter construction / fusion (wrapper-side, outside the kernel)
# ----------------------------------------------------------------------------

def _init_linear(key, fan_in, fan_out):
    """Deterministic nn.Linear-style init: U(-1/sqrt(fan_in), 1/sqrt(fan_in))."""
    kw, kb = jax.random.split(key)
    bound = 1.0 / np.sqrt(fan_in)
    w = jax.random.uniform(kw, (fan_in, fan_out), jnp.float32, -bound, bound)
    b = jax.random.uniform(kb, (1, fan_out), jnp.float32, -bound, bound)
    return w, b


def init_params(key, embed_dim, hidden):
    in_dim = embed_dim * 5
    keys = jax.random.split(key, 6)
    # forward MLP
    fw1, fb1 = _init_linear(keys[0], in_dim, hidden)
    fw2, fb2 = _init_linear(keys[1], hidden, hidden)
    fwo, fbo = _init_linear(keys[2], hidden, 1)
    # backward MLP (bidirectional=True)
    bw1, bb1 = _init_linear(keys[3], in_dim, hidden)
    bw2, bb2 = _init_linear(keys[4], hidden, hidden)
    bwo, bbo = _init_linear(keys[5], hidden, 1)
    return [fw1, fb1, fw2, fb2, fwo, fbo, bw1, bb1, bw2, bb2, bwo, bbo]


def prepare_params(params, embed_dim):
    """Fuse fwd/bwd first layers and cast matrix weights to bf16.

    feat_b @ bw1 == feat_f @ bw1_perm with row-blocks
      [bw1[E:2E]; bw1[0:E]; -bw1[2E:3E]; bw1[3E:4E]; bw1[4E:5E]].
    """
    (fw1, fb1, fw2, fb2, fwo, fbo,
     bw1, bb1, bw2, bb2, bwo, bbo) = params
    E = embed_dim
    bw1_perm = jnp.concatenate(
        [bw1[E:2 * E], bw1[0:E], -bw1[2 * E:3 * E],
         bw1[3 * E:4 * E], bw1[4 * E:5 * E]], axis=0)
    w1f = jnp.concatenate([fw1, bw1_perm], axis=1).astype(jnp.bfloat16)  # [5E, 2H]
    b1f = jnp.concatenate([fb1, bb1], axis=1).astype(jnp.float32)        # [1, 2H]
    return (w1f, b1f,
            fw2.astype(jnp.bfloat16), fb2.astype(jnp.float32),
            bw2.astype(jnp.bfloat16), bb2.astype(jnp.float32),
            fwo.T.astype(jnp.bfloat16), fbo.astype(jnp.float32),   # [1, H]
            bwo.T.astype(jnp.bfloat16), bbo.astype(jnp.float32))   # [1, H]


# ----------------------------------------------------------------------------
# Pure-JAX reference (original PyTorch module semantics)
# ----------------------------------------------------------------------------

def _reference(s1, s2, params, *, round_weights_to_bf16=False):
    (fw1, fb1, fw2, fb2, fwo, fbo,
     bw1, bb1, bw2, bb2, bwo, bbo) = params

    def maybe_round(w):
        if round_weights_to_bf16:
            return w.astype(jnp.bfloat16).astype(jnp.float32)
        return w

    def mlp(x, w1, b1, w2, b2, wo, bo):
        h = jnp.maximum(x @ maybe_round(w1) + b1, 0.0)
        h = jnp.maximum(h @ maybe_round(w2) + b2, 0.0)
        return jax.nn.sigmoid(h @ maybe_round(wo) + bo)

    fwd = jnp.concatenate([s1, s2, s1 - s2, s1 * s2, jnp.abs(s1 - s2)], -1)
    bwd = jnp.concatenate([s2, s1, s2 - s1, s1 * s2, jnp.abs(s1 - s2)], -1)
    f = mlp(fwd, fw1, fb1, fw2, fb2, fwo, fbo)
    b = mlp(bwd, bw1, bb1, bw2, bb2, bwo, bbo)
    return (f + b) / 2


if __name__ == "__main__":
    B = 8
    EMBED_DIM = 128      # embed_dim
    HIDDEN = 128         # hparams['hidden_state'], hidden_layers = 2

    key = jax.random.PRNGKey(0)
    k_s1, k_s2, k_p = jax.random.split(key, 3)
    s1 = jax.random.normal(k_s1, (B, EMBED_DIM), jnp.float32)
    s2 = jax.random.normal(k_s2, (B, EMBED_DIM), jnp.float32)

    params = init_params(k_p, EMBED_DIM, HIDDEN)
    fused = prepare_params(params, EMBED_DIM)

    scores = mlp_discriminator(s1, s2, fused)
    jax.block_until_ready(scores)

    # Exact-semantics check against a reference using the same bf16-rounded
    # weights (kernel accumulates in f32, so tolerances stay tight).
    ref_bf16 = _reference(s1, s2, params, round_weights_to_bf16=True)
    np.testing.assert_allclose(np.asarray(scores), np.asarray(ref_bf16),
                               rtol=1e-4, atol=1e-4)

    # Loose sanity check against the full-f32 reference (bf16 weight rounding).
    ref_f32 = _reference(s1, s2, params, round_weights_to_bf16=False)
    np.testing.assert_allclose(np.asarray(scores), np.asarray(ref_f32),
                               rtol=5e-2, atol=5e-2)

    print("KERNEL_OK")
</pallas_src>

<mosaic_0001>
module attributes {stable_mosaic.version = 11 : i64} {
  func.func @_mlp_disc_kernel(%arg0: i32, %arg1: memref<8x128xf32, #tpu.memory_space<vmem>>, %arg2: memref<8x128xf32, #tpu.memory_space<vmem>>, %arg3: memref<640x256xbf16, #tpu.memory_space<vmem>>, %arg4: memref<1x256xf32, #tpu.memory_space<vmem>>, %arg5: memref<128x128xbf16, #tpu.memory_space<vmem>>, %arg6: memref<1x128xf32, #tpu.memory_space<vmem>>, %arg7: memref<128x128xbf16, #tpu.memory_space<vmem>>, %arg8: memref<1x128xf32, #tpu.memory_space<vmem>>, %arg9: memref<1x128xbf16, #tpu.memory_space<vmem>>, %arg10: memref<1x1xf32, #tpu.memory_space<vmem>>, %arg11: memref<1x128xbf16, #tpu.memory_space<vmem>>, %arg12: memref<1x1xf32, #tpu.memory_space<vmem>>, %arg13: memref<8x1xf32, #tpu.memory_space<vmem>>) attributes {dimension_semantics = [#tpu.dimension_semantics<parallel>], iteration_bounds = array<i64: 1>, scalar_prefetch = 0 : i64, scratch_operands = 0 : i64, tpu.core_type = #tpu.core_type<tc>, window_params = [{transform_indices = @transform_0, window_bounds = array<i64: 8, 128>}, {transform_indices = @transform_1, window_bounds = array<i64: 8, 128>}, {pipeline_mode = #tpu.pipeline_mode<synchronous>, transform_indices = @transform_2, window_bounds = array<i64: 640, 256>}, {pipeline_mode = #tpu.pipeline_mode<synchronous>, transform_indices = @transform_3, window_bounds = array<i64: 1, 256>}, {pipeline_mode = #tpu.pipeline_mode<synchronous>, transform_indices = @transform_4, window_bounds = array<i64: 128, 128>}, {pipeline_mode = #tpu.pipeline_mode<synchronous>, transform_indices = @transform_5, window_bounds = array<i64: 1, 128>}, {pipeline_mode = #tpu.pipeline_mode<synchronous>, transform_indices = @transform_6, window_bounds = array<i64: 128, 128>}, {pipeline_mode = #tpu.pipeline_mode<synchronous>, transform_indices = @transform_7, window_bounds = array<i64: 1, 128>}, {pipeline_mode = #tpu.pipeline_mode<synchronous>, transform_indices = @transform_8, window_bounds = array<i64: 1, 128>}, {pipeline_mode = #tpu.pipeline_mode<synchronous>, transform_indices = @transform_9, window_bounds = array<i64: 1, 1>}, {pipeline_mode = #tpu.pipeline_mode<synchronous>, transform_indices = @transform_10, window_bounds = array<i64: 1, 128>}, {pipeline_mode = #tpu.pipeline_mode<synchronous>, transform_indices = @transform_11, window_bounds = array<i64: 1, 1>}, {transform_indices = @transform_12, window_bounds = array<i64: 8, 1>}]} {
    %c0 = arith.constant 0 : index
    %c0_0 = arith.constant 0 : index
    %0 = vector.load %arg1[%c0, %c0_0] : memref<8x128xf32, #tpu.memory_space<vmem>>, vector<8x128xf32>
    %c0_1 = arith.constant 0 : index
    %c0_2 = arith.constant 0 : index
    %1 = vector.load %arg2[%c0_1, %c0_2] : memref<8x128xf32, #tpu.memory_space<vmem>>, vector<8x128xf32>
    %2 = arith.subf %0, %1 : vector<8x128xf32>
    %3 = arith.mulf %0, %1 : vector<8x128xf32>
    %4 = math.absf %2 : vector<8x128xf32>
    %c0_3 = arith.constant 0 : index
    %c0_4 = arith.constant 0 : index
    %5 = vector.load %arg3[%c0_3, %c0_4] : memref<640x256xbf16, #tpu.memory_space<vmem>>, vector<128x256xbf16>
    %6 = arith.extf %5 : vector<128x256xbf16> to vector<128x256xf32>
    %cst = arith.constant dense<0.000000e+00> : vector<8x256xf32>
    %7 = tpu.matmul %0, %6, %cst {dimension_numbers = #tpu.dot_dimension_numbers<[1], [0], [0], [1], [0, 0, 1, 1], [], []>} : vector<8x128xf32>, vector<128x256xf32>, vector<8x256xf32> -> vector<8x256xf32>
    %c128 = arith.constant 128 : index
    %c0_5 = arith.constant 0 : index
    %8 = vector.load %arg3[%c128, %c0_5] : memref<640x256xbf16, #tpu.memory_space<vmem>>, vector<128x256xbf16>
    %9 = arith.extf %8 : vector<128x256xbf16> to vector<128x256xf32>
    %cst_6 = arith.constant dense<0.000000e+00> : vector<8x256xf32>
    %10 = tpu.matmul %1, %9, %cst_6 {dimension_numbers = #tpu.dot_dimension_numbers<[1], [0], [0], [1], [0, 0, 1, 1], [], []>} : vector<8x128xf32>, vector<128x256xf32>, vector<8x256xf32> -> vector<8x256xf32>
    %11 = arith.addf %7, %10 : vector<8x256xf32>
    %c256 = arith.constant 256 : index
    %c0_7 = arith.constant 0 : index
    %12 = vector.load %arg3[%c256, %c0_7] : memref<640x256xbf16, #tpu.memory_space<vmem>>, vector<128x256xbf16>
    %13 = arith.extf %12 : vector<128x256xbf16> to vector<128x256xf32>
    %cst_8 = arith.constant dense<0.000000e+00> : vector<8x256xf32>
    %14 = tpu.matmul %2, %13, %cst_8 {dimension_numbers = #tpu.dot_dimension_numbers<[1], [0], [0], [1], [0, 0, 1, 1], [], []>} : vector<8x128xf32>, vector<128x256xf32>, vector<8x256xf32> -> vector<8x256xf32>
    %15 = arith.addf %11, %14 : vector<8x256xf32>
    %c384 = arith.constant 384 : index
    %c0_9 = arith.constant 0 : index
    %16 = vector.load %arg3[%c384, %c0_9] : memref<640x256xbf16, #tpu.memory_space<vmem>>, vector<128x256xbf16>
    %17 = arith.extf %16 : vector<128x256xbf16> to vector<128x256xf32>
    %cst_10 = arith.constant dense<0.000000e+00> : vector<8x256xf32>
    %18 = tpu.matmul %3, %17, %cst_10 {dimension_numbers = #tpu.dot_dimension_numbers<[1], [0], [0], [1], [0, 0, 1, 1], [], []>} : vector<8x128xf32>, vector<128x256xf32>, vector<8x256xf32> -> vector<8x256xf32>
    %19 = arith.addf %15, %18 : vector<8x256xf32>
    %c512 = arith.constant 512 : index
    %c0_11 = arith.constant 0 : index
    %20 = vector.load %arg3[%c512, %c0_11] : memref<640x256xbf16, #tpu.memory_space<vmem>>, vector<128x256xbf16>
    %21 = arith.extf %20 : vector<128x256xbf16> to vector<128x256xf32>
    %cst_12 = arith.constant dense<0.000000e+00> : vector<8x256xf32>
    %22 = tpu.matmul %4, %21, %cst_12 {dimension_numbers = #tpu.dot_dimension_numbers<[1], [0], [0], [1], [0, 0, 1, 1], [], []>} : vector<8x128xf32>, vector<128x256xf32>, vector<8x256xf32> -> vector<8x256xf32>
    %23 = arith.addf %19, %22 : vector<8x256xf32>
    %c0_13 = arith.constant 0 : index
    %c0_14 = arith.constant 0 : index
    %24 = vector.load %arg4[%c0_13, %c0_14] : memref<1x256xf32, #tpu.memory_space<vmem>>, vector<1x256xf32>
    %25 = vector.broadcast %24 : vector<1x256xf32> to vector<8x256xf32>
    %26 = arith.addf %23, %25 : vector<8x256xf32>
    %cst_15 = arith.constant 0.000000e+00 : f32
    %27 = vector.broadcast %cst_15 : f32 to vector<8x256xf32>
    %28 = arith.maximumf %26, %27 : vector<8x256xf32>
    %29 = vector.extract_strided_slice %28 {offsets = [0, 0], sizes = [8, 128], strides = [1, 1]} : vector<8x256xf32> to vector<8x128xf32>
    %30 = vector.extract_strided_slice %28 {offsets = [0, 128], sizes = [8, 128], strides = [1, 1]} : vector<8x256xf32> to vector<8x128xf32>
    %c0_16 = arith.constant 0 : index
    %c0_17 = arith.constant 0 : index
    %31 = vector.load %arg5[%c0_16, %c0_17] : memref<128x128xbf16, #tpu.memory_space<vmem>>, vector<128x128xbf16>
    %32 = arith.extf %31 : vector<128x128xbf16> to vector<128x128xf32>
    %cst_18 = arith.constant dense<0.000000e+00> : vector<8x128xf32>
    %33 = tpu.matmul %29, %32, %cst_18 {dimension_numbers = #tpu.dot_dimension_numbers<[1], [0], [0], [1], [0, 0, 1, 1], [], []>} : vector<8x128xf32>, vector<128x128xf32>, vector<8x128xf32> -> vector<8x128xf32>
    %c0_19 = arith.constant 0 : index
    %c0_20 = arith.constant 0 : index
    %34 = vector.load %arg6[%c0_19, %c0_20] : memref<1x128xf32, #tpu.memory_space<vmem>>, vector<1x128xf32>
    %35 = vector.broadcast %34 : vector<1x128xf32> to vector<8x128xf32>
    %36 = arith.addf %33, %35 : vector<8x128xf32>
    %cst_21 = arith.constant 0.000000e+00 : f32
    %37 = vector.broadcast %cst_21 : f32 to vector<8x128xf32>
    %38 = arith.maximumf %36, %37 : vector<8x128xf32>
    %c0_22 = arith.constant 0 : index
    %c0_23 = arith.constant 0 : index
    %39 = vector.load %arg7[%c0_22, %c0_23] : memref<128x128xbf16, #tpu.memory_space<vmem>>, vector<128x128xbf16>
    %40 = arith.extf %39 : vector<128x128xbf16> to vector<128x128xf32>
    %cst_24 = arith.constant dense<0.000000e+00> : vector<8x128xf32>
    %41 = tpu.matmul %30, %40, %cst_24 {dimension_numbers = #tpu.dot_dimension_numbers<[1], [0], [0], [1], [0, 0, 1, 1], [], []>} : vector<8x128xf32>, vector<128x128xf32>, vector<8x128xf32> -> vector<8x128xf32>
    %c0_25 = arith.constant 0 : index
    %c0_26 = arith.constant 0 : index
    %42 = vector.load %arg8[%c0_25, %c0_26] : memref<1x128xf32, #tpu.memory_space<vmem>>, vector<1x128xf32>
    %43 = vector.broadcast %42 : vector<1x128xf32> to vector<8x128xf32>
    %44 = arith.addf %41, %43 : vector<8x128xf32>
    %cst_27 = arith.constant 0.000000e+00 : f32
    %45 = vector.broadcast %cst_27 : f32 to vector<8x128xf32>
    %46 = arith.maximumf %44, %45 : vector<8x128xf32>
    %c0_28 = arith.constant 0 : index
    %c0_29 = arith.constant 0 : index
    %47 = vector.load %arg9[%c0_28, %c0_29] : memref<1x128xbf16, #tpu.memory_space<vmem>>, vector<1x128xbf16>
    %48 = arith.extf %47 : vector<1x128xbf16> to vector<1x128xf32>
    %49 = vector.broadcast %48 : vector<1x128xf32> to vector<8x128xf32>
    %50 = arith.mulf %38, %49 : vector<8x128xf32>
    %cst_30 = arith.constant dense<0.000000e+00> : vector<8xf32>
    %51 = vector.multi_reduction <add>, %50, %cst_30 [1] : vector<8x128xf32> to vector<8xf32>
    %52 = vector.shape_cast %51 : vector<8xf32> to vector<8x1xf32>
    %c0_31 = arith.constant 0 : index
    %c0_32 = arith.constant 0 : index
    %53 = vector.load %arg10[%c0_31, %c0_32] : memref<1x1xf32, #tpu.memory_space<vmem>>, vector<1x1xf32>
    %54 = vector.broadcast %53 : vector<1x1xf32> to vector<8x1xf32>
    %55 = arith.addf %52, %54 : vector<8x1xf32>
    %c0_33 = arith.constant 0 : index
    %c0_34 = arith.constant 0 : index
    %56 = vector.load %arg11[%c0_33, %c0_34] : memref<1x128xbf16, #tpu.memory_space<vmem>>, vector<1x128xbf16>
    %57 = arith.extf %56 : vector<1x128xbf16> to vector<1x128xf32>
    %58 = vector.broadcast %57 : vector<1x128xf32> to vector<8x128xf32>
    %59 = arith.mulf %46, %58 : vector<8x128xf32>
    %cst_35 = arith.constant dense<0.000000e+00> : vector<8xf32>
    %60 = vector.multi_reduction <add>, %59, %cst_35 [1] : vector<8x128xf32> to vector<8xf32>
    %61 = vector.shape_cast %60 : vector<8xf32> to vector<8x1xf32>
    %c0_36 = arith.constant 0 : index
    %c0_37 = arith.constant 0 : index
    %62 = vector.load %arg12[%c0_36, %c0_37] : memref<1x1xf32, #tpu.memory_space<vmem>>, vector<1x1xf32>
    %63 = vector.broadcast %62 : vector<1x1xf32> to vector<8x1xf32>
    %64 = arith.addf %61, %63 : vector<8x1xf32>
    %65 = arith.negf %55 : vector<8x1xf32>
    %66 = math.exp %65 : vector<8x1xf32>
    %cst_38 = arith.constant 1.000000e+00 : f32
    %67 = vector.broadcast %cst_38 : f32 to vector<8x1xf32>
    %68 = arith.addf %67, %66 : vector<8x1xf32>
    %69 = arith.divf %67, %68 : vector<8x1xf32>
    %70 = arith.negf %64 : vector<8x1xf32>
    %71 = math.exp %70 : vector<8x1xf32>
    %cst_39 = arith.constant 1.000000e+00 : f32
    %72 = vector.broadcast %cst_39 : f32 to vector<8x1xf32>
    %73 = arith.addf %72, %71 : vector<8x1xf32>
    %74 = arith.divf %72, %73 : vector<8x1xf32>
    %75 = arith.addf %69, %74 : vector<8x1xf32>
    %cst_40 = arith.constant 5.000000e-01 : f32
    %76 = vector.broadcast %cst_40 : f32 to vector<8x1xf32>
    %77 = arith.mulf %75, %76 : vector<8x1xf32>
    %c0_41 = arith.constant 0 : index
    %c0_42 = arith.constant 0 : index
    %78 = vector.load %arg13[%c0_41, %c0_42] : memref<8x1xf32, #tpu.memory_space<vmem>>, vector<8x1xf32>
    tpu.vector_store %arg13[%c0_41, %c0_42], %77 {strides = array<i32>} : memref<8x1xf32, #tpu.memory_space<vmem>>, vector<8x1xf32>,
    return
  }
  func.func @transform_0(%arg0: i32) -> (i32, i32) {
    %c0_i32 = arith.constant 0 : i32
    %c0_i32_0 = arith.constant 0 : i32
    return %arg0, %c0_i32 : i32, i32
  }
  func.func @transform_1(%arg0: i32) -> (i32, i32) {
    %c0_i32 = arith.constant 0 : i32
    %c0_i32_0 = arith.constant 0 : i32
    return %arg0, %c0_i32 : i32, i32
  }
  func.func @transform_2(%arg0: i32) -> (i32, i32) {
    %c0_i32 = arith.constant 0 : i32
    %c0_i32_0 = arith.constant 0 : i32
    %c0_i32_1 = arith.constant 0 : i32
    return %c0_i32, %c0_i32_0 : i32, i32
  }
  func.func @transform_3(%arg0: i32) -> (i32, i32) {
    %c0_i32 = arith.constant 0 : i32
    %c0_i32_0 = arith.constant 0 : i32
    %c0_i32_1 = arith.constant 0 : i32
    return %c0_i32, %c0_i32_0 : i32, i32
  }
  func.func @transform_4(%arg0: i32) -> (i32, i32) {
    %c0_i32 = arith.constant 0 : i32
    %c0_i32_0 = arith.constant 0 : i32
    %c0_i32_1 = arith.constant 0 : i32
    return %c0_i32, %c0_i32_0 : i32, i32
  }
  func.func @transform_5(%arg0: i32) -> (i32, i32) {
    %c0_i32 = arith.constant 0 : i32
    %c0_i32_0 = arith.constant 0 : i32
    %c0_i32_1 = arith.constant 0 : i32
    return %c0_i32, %c0_i32_0 : i32, i32
  }
  func.func @transform_6(%arg0: i32) -> (i32, i32) {
    %c0_i32 = arith.constant 0 : i32
    %c0_i32_0 = arith.constant 0 : i32
    %c0_i32_1 = arith.constant 0 : i32
    return %c0_i32, %c0_i32_0 : i32, i32
  }
  func.func @transform_7(%arg0: i32) -> (i32, i32) {
    %c0_i32 = arith.constant 0 : i32
    %c0_i32_0 = arith.constant 0 : i32
    %c0_i32_1 = arith.constant 0 : i32
    return %c0_i32, %c0_i32_0 : i32, i32
  }
  func.func @transform_8(%arg0: i32) -> (i32, i32) {
    %c0_i32 = arith.constant 0 : i32
    %c0_i32_0 = arith.constant 0 : i32
    %c0_i32_1 = arith.constant 0 : i32
    return %c0_i32, %c0_i32_0 : i32, i32
  }
  func.func @transform_9(%arg0: i32) -> (i32, i32) {
    %c0_i32 = arith.constant 0 : i32
    %c0_i32_0 = arith.constant 0 : i32
    %c0_i32_1 = arith.constant 0 : i32
    return %c0_i32, %c0_i32_0 : i32, i32
  }
  func.func @transform_10(%arg0: i32) -> (i32, i32) {
    %c0_i32 = arith.constant 0 : i32
    %c0_i32_0 = arith.constant 0 : i32
    %c0_i32_1 = arith.constant 0 : i32
    return %c0_i32, %c0_i32_0 : i32, i32
  }
  func.func @transform_11(%arg0: i32) -> (i32, i32) {
    %c0_i32 = arith.constant 0 : i32
    %c0_i32_0 = arith.constant 0 : i32
    %c0_i32_1 = arith.constant 0 : i32
    return %c0_i32, %c0_i32_0 : i32, i32
  }
  func.func @transform_12(%arg0: i32) -> (i32, i32) {
    %c0_i32 = arith.constant 0 : i32
    %c0_i32_0 = arith.constant 0 : i32
    return %arg0, %c0_i32 : i32, i32
  }
}

</mosaic_0001>

<llo_original>
// kernel: mlp_discriminator.1
$region0: #{mlp_discriminator.1}
  #allocation0 [shape = 'u32[]', space=smem, size = 0x4, offset = 0x4, fixed_abs, tag = 'smem constant byte address 0x4 - core index']
  #allocation1 [shape = 'u32[144,128]{1,0:T(1,128)}', space=vmem, size = 0x12000, scoped, tag = 'internal scratch']
  #allocation2 [shape = 'f32[1,1]{1,0:T(1,128)S(1)}', space=vmem, size = 0x200, scoped, tag = 'scoped memory for mlp_discriminator.1']
  #allocation3 [shape = 'f32[1,1]{1,0:T(1,128)S(1)}', space=vmem, size = 0x200, scoped, tag = 'scoped memory for mlp_discriminator.1']
  %s0 = inlined_call_operand.hbm [shape: f32[8,128], index: 0, kind: input, shape index: {}]
  %s1 = inlined_call_operand.hbm [shape: f32[8,128], index: 1, kind: input, shape index: {}]
  %s2 = inlined_call_operand.hbm [shape: bf16[640,256], index: 2, kind: input, shape index: {}]
  %s3 = inlined_call_operand.vmem [shape: f32[1,256], index: 3, kind: input, shape index: {}]
  %s4 = inlined_call_operand.hbm [shape: bf16[128,128], index: 4, kind: input, shape index: {}]
  %s5 = inlined_call_operand.vmem [shape: f32[1,128], index: 5, kind: input, shape index: {}]
  %s6 = inlined_call_operand.hbm [shape: bf16[128,128], index: 6, kind: input, shape index: {}]
  %s7 = inlined_call_operand.vmem [shape: f32[1,128], index: 7, kind: input, shape index: {}]
  %s8 = inlined_call_operand.vmem [shape: bf16[1,128], index: 8, kind: input, shape index: {}]
  %s9 = inlined_call_operand.<no memory space> [shape: f32[1,1], index: 9, kind: input, shape index: {}]
  %s10 = inlined_call_operand.vmem [shape: bf16[1,128], index: 10, kind: input, shape index: {}]
  %s11 = inlined_call_operand.<no memory space> [shape: f32[1,1], index: 11, kind: input, shape index: {}]
  %s12 = inlined_call_operand.vmem [shape: f32[8,1], index: 12, kind: output, shape index: {}]
  %s13 = sld [smem:[#allocation0]]
  $region78: #{mlp_discriminator.1} parent=0
    _
  %s15 = ssub.s32 1, %s13
  %s16 = scalar_select 0, %s15, %s13
  %v17 = vstv %s9
  %18 = vst [vmem:[#allocation2] sm:$0x1] %v17
  %v19 = vstv %s11
  %20 = vst [vmem:[#allocation3] sm:$0x1] %v19
  $region1: #{mlp_discriminator.1} parent=0
    #allocation4 [shape = 'u8[4096]{0}', space=vmem, size = 0x1000, scoped, tag = 'input window, operand 0, single buffered']
    #allocation5 [shape = 's32[1]{0}', space=sflag, size = 0x4, scoped, tag = 'scoped memory for mlp_discriminator.1']
    #allocation6 [shape = 'u8[4096]{0}', space=vmem, size = 0x1000, scoped, tag = 'input window, operand 1, single buffered']
    #allocation7 [shape = 's32[1]{0}', space=sflag, size = 0x4, scoped, tag = 'scoped memory for mlp_discriminator.1']
    #allocation8 [shape = 'u8[327680]{0}', space=vmem, size = 0x50000, scoped, tag = 'input window, operand 2, single buffered']
    #allocation9 [shape = 'u8[32768]{0}', space=vmem, size = 0x8000, scoped, tag = 'input window, operand 4, single buffered']
    #allocation10 [shape = 's32[1]{0}', space=sflag, size = 0x4, scoped, tag = 'scoped memory for mlp_discriminator.1']
    #allocation11 [shape = 'u8[32768]{0}', space=vmem, size = 0x8000, scoped, tag = 'input window, operand 6, single buffered']
    %21 = vsyncpa [#allocation5], 0
    %22 = vsyncpa [#allocation7], 0
    %23 = vsyncpa [#allocation10], 0
    // Predicated region
    $region2: #{mlp_discriminator.1} parent=1 // pred_check
      _
    $region3: #{mlp_discriminator.1} parent=1 // pred_check_branch
      %25 = sbr.rel (0) target = $region5
    $region4: #{mlp_discriminator.1} parent=1 // pred_region
      %s27 = ssub.s32 128, 128
      %28 = vsyncadd [#allocation5], %s27
      %s30 = sshll.u32 [#allocation4], 4
      %s31 = int_to_ptr.vmem [resolvable:$true] %s30
      %33 = dma.hbm_to_vmem [thread:$0]  %s0, 128, %s31, [#allocation5]
    $region5: #{mlp_discriminator.1} parent=1 // pred_fallthru
      _
    // Predicated region
    $region6: #{mlp_discriminator.1} parent=1 // pred_check
      _
    $region7: #{mlp_discriminator.1} parent=1 // pred_check_branch
      %35 = sbr.rel (0) target = $region9
    $region8: #{mlp_discriminator.1} parent=1 // pred_region
      %s37 = ssub.s32 128, 128
      %38 = vsyncadd [#allocation7], %s37
      %s40 = sshll.u32 [#allocation6], 4
      %s41 = int_to_ptr.vmem [resolvable:$true] %s40
      %43 = dma.hbm_to_vmem [thread:$0]  %s1, 128, %s41, [#allocation7]
    $region9: #{mlp_discriminator.1} parent=1 // pred_fallthru
      _
    // Predicated region
    $region10: #{mlp_discriminator.1} parent=1 // pred_check
      _
    $region11: #{mlp_discriminator.1} parent=1 // pred_check_branch
      %45 = sbr.rel (0) target = $region13
    $region12: #{mlp_discriminator.1} parent=1 // pred_region
      %s47 = ssub.s32 10240, 10240
      %48 = vsyncadd [#allocation7], %s47
      %s49 = sshll.u32 [#allocation8], 4
      %s50 = int_to_ptr.vmem [resolvable:$true] %s49
      %55 = dma.hbm_to_vmem [thread:$0]  %s2, 10240, %s50, [#allocation7], 128, 128, 8
    $region13: #{mlp_discriminator.1} parent=1 // pred_fallthru
      _
    // Predicated region
    $region14: #{mlp_discriminator.1} parent=1 // pred_check
      _
    $region15: #{mlp_discriminator.1} parent=1 // pred_check_branch
      %57 = sbr.rel (0) target = $region17
    $region16: #{mlp_discriminator.1} parent=1 // pred_region
      _
    $region17: #{mlp_discriminator.1} parent=1 // pred_fallthru
      _
    // Predicated region
    $region18: #{mlp_discriminator.1} parent=1 // pred_check
      _
    $region19: #{mlp_discriminator.1} parent=1 // pred_check_branch
      %59 = sbr.rel (0) target = $region21
    $region20: #{mlp_discriminator.1} parent=1 // pred_region
      %s61 = ssub.s32 1024, 1024
      %62 = vsyncadd [#allocation10], %s61
      %s63 = sshll.u32 [#allocation9], 4
      %s64 = int_to_ptr.vmem [resolvable:$true] %s63
      %69 = dma.hbm_to_vmem [thread:$0]  %s4, 1024, %s64, [#allocation10], 64, 64, 4
    $region21: #{mlp_discriminator.1} parent=1 // pred_fallthru
      _
    // Predicated region
    $region22: #{mlp_discriminator.1} parent=1 // pred_check
      _
    $region23: #{mlp_discriminator.1} parent=1 // pred_check_branch
      %71 = sbr.rel (0) target = $region25
    $region24: #{mlp_discriminator.1} parent=1 // pred_region
      _
    $region25: #{mlp_discriminator.1} parent=1 // pred_fallthru
      _
    // Predicated region
    $region26: #{mlp_discriminator.1} parent=1 // pred_check
      _
    $region27: #{mlp_discriminator.1} parent=1 // pred_check_branch
      %73 = sbr.rel (0) target = $region29
    $region28: #{mlp_discriminator.1} parent=1 // pred_region
      %s75 = ssub.s32 1024, 1024
      %76 = vsyncadd [#allocation10], %s75
      %s77 = sshll.u32 [#allocation11], 4
      %s78 = int_to_ptr.vmem [resolvable:$true] %s77
      %83 = dma.hbm_to_vmem [thread:$0]  %s6, 1024, %s78, [#allocation10], 64, 64, 4
    $region29: #{mlp_discriminator.1} parent=1 // pred_fallthru
      _
    // Predicated region
    $region30: #{mlp_discriminator.1} parent=1 // pred_check
      _
    $region31: #{mlp_discriminator.1} parent=1 // pred_check_branch
      %85 = sbr.rel (0) target = $region33
    $region32: #{mlp_discriminator.1} parent=1 // pred_region
      _
    $region33: #{mlp_discriminator.1} parent=1 // pred_fallthru
      _
    // Predicated region
    $region34: #{mlp_discriminator.1} parent=1 // pred_check
      _
    $region35: #{mlp_discriminator.1} parent=1 // pred_check_branch
      %87 = sbr.rel (0) target = $region37
    $region36: #{mlp_discriminator.1} parent=1 // pred_region
      _
    $region37: #{mlp_discriminator.1} parent=1 // pred_fallthru
      _
    // Predicated region
    $region38: #{mlp_discriminator.1} parent=1 // pred_check
      _
    $region39: #{mlp_discriminator.1} parent=1 // pred_check_branch
      %89 = sbr.rel (0) target = $region41
    $region40: #{mlp_discriminator.1} parent=1 // pred_region
      _
    $region41: #{mlp_discriminator.1} parent=1 // pred_fallthru
      _
    // Predicated region
    $region42: #{mlp_discriminator.1} parent=1 // pred_check
      _
    $region43: #{mlp_discriminator.1} parent=1 // pred_check_branch
      %91 = sbr.rel (0) target = $region45
    $region44: #{mlp_discriminator.1} parent=1 // pred_region
      _
    $region45: #{mlp_discriminator.1} parent=1 // pred_fallthru
      _
    // Predicated region
    $region46: #{mlp_discriminator.1} parent=1 // pred_check
      _
    $region47: #{mlp_discriminator.1} parent=1 // pred_check_branch
      %93 = sbr.rel (0) target = $region49
    $region48: #{mlp_discriminator.1} parent=1 // pred_region
      _
    $region49: #{mlp_discriminator.1} parent=1 // pred_fallthru
      _
    // Predicated region
    $region50: #{mlp_discriminator.1} parent=1 // pred_check
      _
    $region51: #{mlp_discriminator.1} parent=1 // pred_check_branch
      %95 = sbr.rel (0) target = $region53
    $region52: #{mlp_discriminator.1} parent=1 // pred_region
      %96 = dma.done [#allocation5], 128
    $region53: #{mlp_discriminator.1} parent=1 // pred_fallthru
      _
    // Predicated region
    $region54: #{mlp_discriminator.1} parent=1 // pred_check
      _
    $region55: #{mlp_discriminator.1} parent=1 // pred_check_branch
      %98 = sbr.rel (0) target = $region57
    $region56: #{mlp_discriminator.1} parent=1 // pred_region
      %99 = dma.done [#allocation7], 128
    $region57: #{mlp_discriminator.1} parent=1 // pred_fallthru
      _
    // Predicated region
    $region58: #{mlp_discriminator.1} parent=1 // pred_check
      _
    $region59: #{mlp_discriminator.1} parent=1 // pred_check_branch
      %101 = sbr.rel (0) target = $region61
    $region60: #{mlp_discriminator.1} parent=1 // pred_region
      %102 = dma.done [#allocation7], 10240
    $region61: #{mlp_discriminator.1} parent=1 // pred_fallthru
      _
    // Predicated region
    $region62: #{mlp_discriminator.1} parent=1 // pred_check
      _
    $region63: #{mlp_discriminator.1} parent=1 // pred_check_branch
      %104 = sbr.rel (0) target = $region65
    $region64: #{mlp_discriminator.1} parent=1 // pred_region
      %105 = dma.done [#allocation10], 1024
    $region65: #{mlp_discriminator.1} parent=1 // pred_fallthru
      _
    // Predicated region
    $region66: #{mlp_discriminator.1} parent=1 // pred_check
      _
    $region67: #{mlp_discriminator.1} parent=1 // pred_check_branch
      %107 = sbr.rel (0) target = $region69
    $region68: #{mlp_discriminator.1} parent=1 // pred_region
      %108 = dma.done [#allocation10], 1024
    $region69: #{mlp_discriminator.1} parent=1 // pred_fallthru
      _
    %v109 = vld [vmem:[#allocation4] sm:$0xff]
    %v110 = vld [vmem:[#allocation6] sm:$0xff]
    %v111 = vsub.f32 %v109, %v110
    %v112 = vmul.f32 %v109, %v110
    %v113 = vand.u32 2147483647, %v111
    %v114 = vld [vmem:[#allocation8] sm:$0xff]
    %v115 = vld [vmem:[#allocation8 + $0x8] sm:$0xff]
    %v116 = vld [vmem:[#allocation8 + $0x10] sm:$0xff]
    %v117 = vld [vmem:[#allocation8 + $0x18] sm:$0xff]
    %v118 = vld [vmem:[#allocation8 + $0x20] sm:$0xff]
    %v119 = vld [vmem:[#allocation8 + $0x28] sm:$0xff]
    %v120 = vld [vmem:[#allocation8 + $0x30] sm:$0xff]
    %v121 = vld [vmem:[#allocation8 + $0x38] sm:$0xff]
    %v122 = vld [vmem:[#allocation8 + $0x40] sm:$0xff]
    %v123 = vld [vmem:[#allocation8 + $0x48] sm:$0xff]
    %v124 = vld [vmem:[#allocation8 + $0x50] sm:$0xff]
    %v125 = vld [vmem:[#allocation8 + $0x58] sm:$0xff]
    %v126 = vld [vmem:[#allocation8 + $0x60] sm:$0xff]
    %v127 = vld [vmem:[#allocation8 + $0x68] sm:$0xff]
    %v128 = vld [vmem:[#allocation8 + $0x70] sm:$0xff]
    %v129 = vld [vmem:[#allocation8 + $0x78] sm:$0xff]
    %v130 = vunpack.c.l.bf16 %v114
    %v131 = vunpack.c.h.bf16 %v114
    %v132 = vunpack.c.l.bf16 %v115
    %v133 = vunpack.c.h.bf16 %v115
    %v134 = vunpack.c.l.bf16 %v116
    %v135 = vunpack.c.h.bf16 %v116
    %v136 = vunpack.c.l.bf16 %v117
    %v137 = vunpack.c.h.bf16 %v117
    %v138 = vunpack.c.l.bf16 %v118
    %v139 = vunpack.c.h.bf16 %v118
    %v140 = vunpack.c.l.bf16 %v119
    %v141 = vunpack.c.h.bf16 %v119
    %v142 = vunpack.c.l.bf16 %v120
    %v143 = vunpack.c.h.bf16 %v120
    %v144 = vunpack.c.l.bf16 %v121
    %v145 = vunpack.c.h.bf16 %v121
    %v146 = vunpack.c.l.bf16 %v122
    %v147 = vunpack.c.h.bf16 %v122
    %v148 = vunpack.c.l.bf16 %v123
    %v149 = vunpack.c.h.bf16 %v123
    %v150 = vunpack.c.l.bf16 %v124
    %v151 = vunpack.c.h.bf16 %v124
    %v152 = vunpack.c.l.bf16 %v125
    %v153 = vunpack.c.h.bf16 %v125
    %v154 = vunpack.c.l.bf16 %v126
    %v155 = vunpack.c.h.bf16 %v126
    %v156 = vunpack.c.l.bf16 %v127
    %v157 = vunpack.c.h.bf16 %v127
    %v158 = vunpack.c.l.bf16 %v128
    %v159 = vunpack.c.h.bf16 %v128
    %v160 = vunpack.c.l.bf16 %v129
    %v161 = vunpack.c.h.bf16 %v129
    %v162 = vld [vmem:[#allocation8 + $0x80] sm:$0xff]
    %v163 = vld [vmem:[#allocation8 + $0x88] sm:$0xff]
    %v164 = vld [vmem:[#allocation8 + $0x90] sm:$0xff]
    %v165 = vld [vmem:[#allocation8 + $0x98] sm:$0xff]
    %v166 = vld [vmem:[#allocation8 + $0xa0] sm:$0xff]
    %v167 = vld [vmem:[#allocation8 + $0xa8] sm:$0xff]
    %v168 = vld [vmem:[#allocation8 + $0xb0] sm:$0xff]
    %v169 = vld [vmem:[#allocation8 + $0xb8] sm:$0xff]
    %v170 = vld [vmem:[#allocation8 + $0xc0] sm:$0xff]
    %v171 = vld [vmem:[#allocation8 + $0xc8] sm:$0xff]
    %v172 = vld [vmem:[#allocation8 + $0xd0] sm:$0xff]
    %v173 = vld [vmem:[#allocation8 + $0xd8] sm:$0xff]
    %v174 = vld [vmem:[#allocation8 + $0xe0] sm:$0xff]
    %v175 = vld [vmem:[#allocation8 + $0xe8] sm:$0xff]
    %v176 = vld [vmem:[#allocation8 + $0xf0] sm:$0xff]
    %v177 = vld [vmem:[#allocation8 + $0xf8] sm:$0xff]
    %v178 = vunpack.c.l.bf16 %v162
    %v179 = vunpack.c.h.bf16 %v162
    %v180 = vunpack.c.l.bf16 %v163
    %v181 = vunpack.c.h.bf16 %v163
    %v182 = vunpack.c.l.bf16 %v164
    %v183 = vunpack.c.h.bf16 %v164
    %v184 = vunpack.c.l.bf16 %v165
    %v185 = vunpack.c.h.bf16 %v165
    %v186 = vunpack.c.l.bf16 %v166
    %v187 = vunpack.c.h.bf16 %v166
    %v188 = vunpack.c.l.bf16 %v167
    %v189 = vunpack.c.h.bf16 %v167
    %v190 = vunpack.c.l.bf16 %v168
    %v191 = vunpack.c.h.bf16 %v168
    %v192 = vunpack.c.l.bf16 %v169
    %v193 = vunpack.c.h.bf16 %v169
    %v194 = vunpack.c.l.bf16 %v170
    %v195 = vunpack.c.h.bf16 %v170
    %v196 = vunpack.c.l.bf16 %v171
    %v197 = vunpack.c.h.bf16 %v171
    %v198 = vunpack.c.l.bf16 %v172
    %v199 = vunpack.c.h.bf16 %v172
    %v200 = vunpack.c.l.bf16 %v173
    %v201 = vunpack.c.h.bf16 %v173
    %v202 = vunpack.c.l.bf16 %v174
    %v203 = vunpack.c.h.bf16 %v174
    %v204 = vunpack.c.l.bf16 %v175
    %v205 = vunpack.c.h.bf16 %v175
    %v206 = vunpack.c.l.bf16 %v176
    %v207 = vunpack.c.h.bf16 %v176
    %v208 = vunpack.c.l.bf16 %v177
    %v209 = vunpack.c.h.bf16 %v177
    %210 = vmatprep.subr.mxu0 %v209
    %211 = vmatpush1.msra.mxu0 %v208
    %212 = vmatprep.subr.mxu0 %v207
    %213 = vmatpush1.msra.mxu0 %v206
    %214 = vmatprep.subr.mxu0 %v205
    %215 = vmatpush1.msra.mxu0 %v204
    %216 = vmatprep.subr.mxu0 %v203
    %217 = vmatpush1.msra.mxu0 %v202
    %218 = vmatprep.subr.mxu0 %v201
    %219 = vmatpush1.msra.mxu0 %v200
    %220 = vmatprep.subr.mxu0 %v199
    %221 = vmatpush1.msra.mxu0 %v198
    %222 = vmatprep.subr.mxu0 %v197
    %223 = vmatpush1.msra.mxu0 %v196
    %224 = vmatprep.subr.mxu0 %v195
    %225 = vmatpush1.msra.mxu0 %v194
    %226 = vmatprep.subr.mxu0 %v193
    %227 = vmatpush1.msra.mxu0 %v192
    %228 = vmatprep.subr.mxu0 %v191
    %229 = vmatpush1.msra.mxu0 %v190
    %230 = vmatprep.subr.mxu0 %v189
    %231 = vmatpush1.msra.mxu0 %v188
    %232 = vmatprep.subr.mxu0 %v187
    %233 = vmatpush1.msra.mxu0 %v186
    %234 = vmatprep.subr.mxu0 %v185
    %235 = vmatpush1.msra.mxu0 %v184
    %236 = vmatprep.subr.mxu0 %v183
    %237 = vmatpush1.msra.mxu0 %v182
    %238 = vmatprep.subr.mxu0 %v181
    %239 = vmatpush1.msra.mxu0 %v180
    %240 = vmatprep.subr.mxu0 %v179
    %241 = vmatpush1.msra.mxu0 %v178
    %242 = vmatprep.subr.mxu0 0.0
    %243 = vmatpush2.msra.mxu0 0.0
    %244 = vmatprep.subr.mxu0 0.0
    %245 = vmatpush2.msra.mxu0 0.0
    %246 = vmatprep.subr.mxu0 0.0
    %247 = vmatpush2.msra.mxu0 0.0
    %248 = vmatprep.subr.mxu0 0.0
    %249 = vmatpush2.msra.mxu0 0.0
    %250 = vmatprep.subr.mxu0 0.0
    %251 = vmatpush2.msra.mxu0 0.0
    %252 = vmatprep.subr.mxu0 0.0
    %253 = vmatpush2.msra.mxu0 0.0
    %254 = vmatprep.subr.mxu0 0.0
    %255 = vmatpush2.msra.mxu0 0.0
    %256 = vmatprep.subr.mxu0 0.0
    %257 = vmatpush2.msra.mxu0 0.0
    %258 = vmatprep.subr.mxu0 0.0
    %259 = vmatpush2.msra.mxu0 0.0
    %260 = vmatprep.subr.mxu0 0.0
    %261 = vmatpush2.msra.mxu0 0.0
    %262 = vmatprep.subr.mxu0 0.0
    %263 = vmatpush2.msra.mxu0 0.0
    %264 = vmatprep.subr.mxu0 0.0
    %265 = vmatpush2.msra.mxu0 0.0
    %266 = vmatprep.subr.mxu0 0.0
    %267 = vmatpush2.msra.mxu0 0.0
    %268 = vmatprep.subr.mxu0 0.0
    %269 = vmatpush2.msra.mxu0 0.0
    %270 = vmatprep.subr.mxu0 0.0
    %271 = vmatpush2.msra.mxu0 0.0
    %272 = vmatprep.subr.mxu0 0.0
    %273 = vmatpush2.msra.mxu0 0.0
    %274 = vmatprep.mubr.f32.mxu0 0.0
    %275 = vmatmul.mubr.f32.gmra.mxu0 %v110
    %v276 = vpop.f32.mrf.mxu0
    %v277 = vadd.f32 0.0, %v276
    %v278 = vpop.f32.mrf.mxu0
    %v279 = vadd.f32 0.0, %v278
    %280 = vdwg.mxu0
    %281 = vmatprep.subr.mxu0 %v161
    %282 = vmatpush1.msra.mxu0 %v160
    %283 = vmatprep.subr.mxu0 %v159
    %284 = vmatpush1.msra.mxu0 %v158
    %285 = vmatprep.subr.mxu0 %v157
    %286 = vmatpush1.msra.mxu0 %v156
    %287 = vmatprep.subr.mxu0 %v155
    %288 = vmatpush1.msra.mxu0 %v154
    %289 = vmatprep.subr.mxu0 %v153
    %290 = vmatpush1.msra.mxu0 %v152
    %291 = vmatprep.subr.mxu0 %v151
    %292 = vmatpush1.msra.mxu0 %v150
    %293 = vmatprep.subr.mxu0 %v149
    %294 = vmatpush1.msra.mxu0 %v148
    %295 = vmatprep.subr.mxu0 %v147
    %296 = vmatpush1.msra.mxu0 %v146
    %297 = vmatprep.subr.mxu0 %v145
    %298 = vmatpush1.msra.mxu0 %v144
    %299 = vmatprep.subr.mxu0 %v143
    %300 = vmatpush1.msra.mxu0 %v142
    %301 = vmatprep.subr.mxu0 %v141
    %302 = vmatpush1.msra.mxu0 %v140
    %303 = vmatprep.subr.mxu0 %v139
    %304 = vmatpush1.msra.mxu0 %v138
    %305 = vmatprep.subr.mxu0 %v137
    %306 = vmatpush1.msra.mxu0 %v136
    %307 = vmatprep.subr.mxu0 %v135
    %308 = vmatpush1.msra.mxu0 %v134
    %309 = vmatprep.subr.mxu0 %v133
    %310 = vmatpush1.msra.mxu0 %v132
    %311 = vmatprep.subr.mxu0 %v131
    %312 = vmatpush1.msra.mxu0 %v130
    %313 = vmatprep.subr.mxu0 0.0
    %314 = vmatpush2.msra.mxu0 0.0
    %315 = vmatprep.subr.mxu0 0.0
    %316 = vmatpush2.msra.mxu0 0.0
    %317 = vmatprep.subr.mxu0 0.0
    %318 = vmatpush2.msra.mxu0 0.0
    %319 = vmatprep.subr.mxu0 0.0
    %320 = vmatpush2.msra.mxu0 0.0
    %321 = vmatprep.subr.mxu0 0.0
    %322 = vmatpush2.msra.mxu0 0.0
    %323 = vmatprep.subr.mxu0 0.0
    %324 = vmatpush2.msra.mxu0 0.0
    %325 = vmatprep.subr.mxu0 0.0
    %326 = vmatpush2.msra.mxu0 0.0
    %327 = vmatprep.subr.mxu0 0.0
    %328 = vmatpush2.msra.mxu0 0.0
    %329 = vmatprep.subr.mxu0 0.0
    %330 = vmatpush2.msra.mxu0 0.0
    %331 = vmatprep.subr.mxu0 0.0
    %332 = vmatpush2.msra.mxu0 0.0
    %333 = vmatprep.subr.mxu0 0.0
    %334 = vmatpush2.msra.mxu0 0.0
    %335 = vmatprep.subr.mxu0 0.0
    %336 = vmatpush2.msra.mxu0 0.0
    %337 = vmatprep.subr.mxu0 0.0
    %338 = vmatpush2.msra.mxu0 0.0
    %339 = vmatprep.subr.mxu0 0.0
    %340 = vmatpush2.msra.mxu0 0.0
    %341 = vmatprep.subr.mxu0 0.0
    %342 = vmatpush2.msra.mxu0 0.0
    %343 = vmatprep.subr.mxu0 0.0
    %344 = vmatpush2.msra.mxu0 0.0
    %345 = vmatprep.mubr.f32.mxu0 0.0
    %346 = vmatmul.mubr.f32.gmra.mxu0 %v109
    %v347 = vpop.f32.mrf.mxu0
    %v348 = vadd.f32 %v277, %v347
    %v349 = vpop.f32.mrf.mxu0
    %v350 = vadd.f32 %v279, %v349
    %351 = vdwg.mxu0
    %v352 = vld [vmem:[#allocation8 + $0x100] sm:$0xff]
    %v353 = vld [vmem:[#allocation8 + $0x108] sm:$0xff]
    %v354 = vld [vmem:[#allocation8 + $0x110] sm:$0xff]
    %v355 = vld [vmem:[#allocation8 + $0x118] sm:$0xff]
    %v356 = vld [vmem:[#allocation8 + $0x120] sm:$0xff]
    %v357 = vld [vmem:[#allocation8 + $0x128] sm:$0xff]
    %v358 = vld [vmem:[#allocation8 + $0x130] sm:$0xff]
    %v359 = vld [vmem:[#allocation8 + $0x138] sm:$0xff]
    %v360 = vld [vmem:[#allocation8 + $0x140] sm:$0xff]
    %v361 = vld [vmem:[#allocation8 + $0x148] sm:$0xff]
    %v362 = vld [vmem:[#allocation8 + $0x150] sm:$0xff]
    %v363 = vld [vmem:[#allocation8 + $0x158] sm:$0xff]
    %v364 = vld [vmem:[#allocation8 + $0x160] sm:$0xff]
    %v365 = vld [vmem:[#allocation8 + $0x168] sm:$0xff]
    %v366 = vld [vmem:[#allocation8 + $0x170] sm:$0xff]
    %v367 = vld [vmem:[#allocation8 + $0x178] sm:$0xff]
    %v368 = vunpack.c.l.bf16 %v352
    %v369 = vunpack.c.h.bf16 %v352
    %v370 = vunpack.c.l.bf16 %v353
    %v371 = vunpack.c.h.bf16 %v353
    %v372 = vunpack.c.l.bf16 %v354
    %v373 = vunpack.c.h.bf16 %v354
    %v374 = vunpack.c.l.bf16 %v355
    %v375 = vunpack.c.h.bf16 %v355
    %v376 = vunpack.c.l.bf16 %v356
    %v377 = vunpack.c.h.bf16 %v356
    %v378 = vunpack.c.l.bf16 %v357
    %v379 = vunpack.c.h.bf16 %v357
    %v380 = vunpack.c.l.bf16 %v358
    %v381 = vunpack.c.h.bf16 %v358
    %v382 = vunpack.c.l.bf16 %v359
    %v383 = vunpack.c.h.bf16 %v359
    %v384 = vunpack.c.l.bf16 %v360
    %v385 = vunpack.c.h.bf16 %v360
    %v386 = vunpack.c.l.bf16 %v361
    %v387 = vunpack.c.h.bf16 %v361
    %v388 = vunpack.c.l.bf16 %v362
    %v389 = vunpack.c.h.bf16 %v362
    %v390 = vunpack.c.l.bf16 %v363
    %v391 = vunpack.c.h.bf16 %v363
    %v392 = vunpack.c.l.bf16 %v364
    %v393 = vunpack.c.h.bf16 %v364
    %v394 = vunpack.c.l.bf16 %v365
    %v395 = vunpack.c.h.bf16 %v365
    %v396 = vunpack.c.l.bf16 %v366
    %v397 = vunpack.c.h.bf16 %v366
    %v398 = vunpack.c.l.bf16 %v367
    %v399 = vunpack.c.h.bf16 %v367
    %400 = vmatprep.subr.mxu0 %v399
    %401 = vmatpush1.msra.mxu0 %v398
    %402 = vmatprep.subr.mxu0 %v397
    %403 = vmatpush1.msra.mxu0 %v396
    %404 = vmatprep.subr.mxu0 %v395
    %405 = vmatpush1.msra.mxu0 %v394
    %406 = vmatprep.subr.mxu0 %v393
    %407 = vmatpush1.msra.mxu0 %v392
    %408 = vmatprep.subr.mxu0 %v391
    %409 = vmatpush1.msra.mxu0 %v390
    %410 = vmatprep.subr.mxu0 %v389
    %411 = vmatpush1.msra.mxu0 %v388
    %412 = vmatprep.subr.mxu0 %v387
    %413 = vmatpush1.msra.mxu0 %v386
    %414 = vmatprep.subr.mxu0 %v385
    %415 = vmatpush1.msra.mxu0 %v384
    %416 = vmatprep.subr.mxu0 %v383
    %417 = vmatpush1.msra.mxu0 %v382
    %418 = vmatprep.subr.mxu0 %v381
    %419 = vmatpush1.msra.mxu0 %v380
    %420 = vmatprep.subr.mxu0 %v379
    %421 = vmatpush1.msra.mxu0 %v378
    %422 = vmatprep.subr.mxu0 %v377
    %423 = vmatpush1.msra.mxu0 %v376
    %424 = vmatprep.subr.mxu0 %v375
    %425 = vmatpush1.msra.mxu0 %v374
    %426 = vmatprep.subr.mxu0 %v373
    %427 = vmatpush1.msra.mxu0 %v372
    %428 = vmatprep.subr.mxu0 %v371
    %429 = vmatpush1.msra.mxu0 %v370
    %430 = vmatprep.subr.mxu0 %v369
    %431 = vmatpush1.msra.mxu0 %v368
    %432 = vmatprep.subr.mxu0 0.0
    %433 = vmatpush2.msra.mxu0 0.0
    %434 = vmatprep.subr.mxu0 0.0
    %435 = vmatpush2.msra.mxu0 0.0
    %436 = vmatprep.subr.mxu0 0.0
    %437 = vmatpush2.msra.mxu0 0.0
    %438 = vmatprep.subr.mxu0 0.0
    %439 = vmatpush2.msra.mxu0 0.0
    %440 = vmatprep.subr.mxu0 0.0
    %441 = vmatpush2.msra.mxu0 0.0
    %442 = vmatprep.subr.mxu0 0.0
    %443 = vmatpush2.msra.mxu0 0.0
    %444 = vmatprep.subr.mxu0 0.0
    %445 = vmatpush2.msra.mxu0 0.0
    %446 = vmatprep.subr.mxu0 0.0
    %447 = vmatpush2.msra.mxu0 0.0
    %448 = vmatprep.subr.mxu0 0.0
    %449 = vmatpush2.msra.mxu0 0.0
    %450 = vmatprep.subr.mxu0 0.0
    %451 = vmatpush2.msra.mxu0 0.0
    %452 = vmatprep.subr.mxu0 0.0
    %453 = vmatpush2.msra.mxu0 0.0
    %454 = vmatprep.subr.mxu0 0.0
    %455 = vmatpush2.msra.mxu0 0.0
    %456 = vmatprep.subr.mxu0 0.0
    %457 = vmatpush2.msra.mxu0 0.0
    %458 = vmatprep.subr.mxu0 0.0
    %459 = vmatpush2.msra.mxu0 0.0
    %460 = vmatprep.subr.mxu0 0.0
    %461 = vmatpush2.msra.mxu0 0.0
    %462 = vmatprep.subr.mxu0 0.0
    %463 = vmatpush2.msra.mxu0 0.0
    %464 = vmatprep.mubr.f32.mxu0 0.0
    %465 = vmatmul.mubr.f32.gmra.mxu0 %v111
    %v466 = vpop.f32.mrf.mxu0
    %v467 = vadd.f32 0.0, %v466
    %v468 = vpop.f32.mrf.mxu0
    %v469 = vadd.f32 0.0, %v468
    %470 = vdwg.mxu0
    %v471 = vadd.f32 %v348, %v467
    %v472 = vadd.f32 %v350, %v469
    %v473 = vld [vmem:[#allocation8 + $0x180] sm:$0xff]
    %v474 = vld [vmem:[#allocation8 + $0x188] sm:$0xff]
    %v475 = vld [vmem:[#allocation8 + $0x190] sm:$0xff]
    %v476 = vld [vmem:[#allocation8 + $0x198] sm:$0xff]
    %v477 = vld [vmem:[#allocation8 + $0x1a0] sm:$0xff]
    %v478 = vld [vmem:[#allocation8 + $0x1a8] sm:$0xff]
    %v479 = vld [vmem:[#allocation8 + $0x1b0] sm:$0xff]
    %v480 = vld [vmem:[#allocation8 + $0x1b8] sm:$0xff]
    %v481 = vld [vmem:[#allocation8 + $0x1c0] sm:$0xff]
    %v482 = vld [vmem:[#allocation8 + $0x1c8] sm:$0xff]
    %v483 = vld [vmem:[#allocation8 + $0x1d0] sm:$0xff]
    %v484 = vld [vmem:[#allocation8 + $0x1d8] sm:$0xff]
    %v485 = vld [vmem:[#allocation8 + $0x1e0] sm:$0xff]
    %v486 = vld [vmem:[#allocation8 + $0x1e8] sm:$0xff]
    %v487 = vld [vmem:[#allocation8 + $0x1f0] sm:$0xff]
    %v488 = vld [vmem:[#allocation8 + $0x1f8] sm:$0xff]
    %v489 = vunpack.c.l.bf16 %v473
    %v490 = vunpack.c.h.bf16 %v473
    %v491 = vunpack.c.l.bf16 %v474
    %v492 = vunpack.c.h.bf16 %v474
    %v493 = vunpack.c.l.bf16 %v475
    %v494 = vunpack.c.h.bf16 %v475
    %v495 = vunpack.c.l.bf16 %v476
    %v496 = vunpack.c.h.bf16 %v476
    %v497 = vunpack.c.l.bf16 %v477
    %v498 = vunpack.c.h.bf16 %v477
    %v499 = vunpack.c.l.bf16 %v478
    %v500 = vunpack.c.h.bf16 %v478
    %v501 = vunpack.c.l.bf16 %v479
    %v502 = vunpack.c.h.bf16 %v479
    %v503 = vunpack.c.l.bf16 %v480
    %v504 = vunpack.c.h.bf16 %v480
    %v505 = vunpack.c.l.bf16 %v481
    %v506 = vunpack.c.h.bf16 %v481
    %v507 = vunpack.c.l.bf16 %v482
    %v508 = vunpack.c.h.bf16 %v482
    %v509 = vunpack.c.l.bf16 %v483
    %v510 = vunpack.c.h.bf16 %v483
    %v511 = vunpack.c.l.bf16 %v484
    %v512 = vunpack.c.h.bf16 %v484
    %v513 = vunpack.c.l.bf16 %v485
    %v514 = vunpack.c.h.bf16 %v485
    %v515 = vunpack.c.l.bf16 %v486
    %v516 = vunpack.c.h.bf16 %v486
    %v517 = vunpack.c.l.bf16 %v487
    %v518 = vunpack.c.h.bf16 %v487
    %v519 = vunpack.c.l.bf16 %v488
    %v520 = vunpack.c.h.bf16 %v488
    %521 = vmatprep.subr.mxu0 %v520
    %522 = vmatpush1.msra.mxu0 %v519
    %523 = vmatprep.subr.mxu0 %v518
    %524 = vmatpush1.msra.mxu0 %v517
    %525 = vmatprep.subr.mxu0 %v516
    %526 = vmatpush1.msra.mxu0 %v515
    %527 = vmatprep.subr.mxu0 %v514
    %528 = vmatpush1.msra.mxu0 %v513
    %529 = vmatprep.subr.mxu0 %v512
    %530 = vmatpush1.msra.mxu0 %v511
    %531 = vmatprep.subr.mxu0 %v510
    %532 = vmatpush1.msra.mxu0 %v509
    %533 = vmatprep.subr.mxu0 %v508
    %534 = vmatpush1.msra.mxu0 %v507
    %535 = vmatprep.subr.mxu0 %v506
    %536 = vmatpush1.msra.mxu0 %v505
    %537 = vmatprep.subr.mxu0 %v504
    %538 = vmatpush1.msra.mxu0 %v503
    %539 = vmatprep.subr.mxu0 %v502
    %540 = vmatpush1.msra.mxu0 %v501
    %541 = vmatprep.subr.mxu0 %v500
    %542 = vmatpush1.msra.mxu0 %v499
    %543 = vmatprep.subr.mxu0 %v498
    %544 = vmatpush1.msra.mxu0 %v497
    %545 = vmatprep.subr.mxu0 %v496
    %546 = vmatpush1.msra.mxu0 %v495
    %547 = vmatprep.subr.mxu0 %v494
    %548 = vmatpush1.msra.mxu0 %v493
    %549 = vmatprep.subr.mxu0 %v492
    %550 = vmatpush1.msra.mxu0 %v491
    %551 = vmatprep.subr.mxu0 %v490
    %552 = vmatpush1.msra.mxu0 %v489
    %553 = vmatprep.subr.mxu0 0.0
    %554 = vmatpush2.msra.mxu0 0.0
    %555 = vmatprep.subr.mxu0 0.0
    %556 = vmatpush2.msra.mxu0 0.0
    %557 = vmatprep.subr.mxu0 0.0
    %558 = vmatpush2.msra.mxu0 0.0
    %559 = vmatprep.subr.mxu0 0.0
    %560 = vmatpush2.msra.mxu0 0.0
    %561 = vmatprep.subr.mxu0 0.0
    %562 = vmatpush2.msra.mxu0 0.0
    %563 = vmatprep.subr.mxu0 0.0
    %564 = vmatpush2.msra.mxu0 0.0
    %565 = vmatprep.subr.mxu0 0.0
    %566 = vmatpush2.msra.mxu0 0.0
    %567 = vmatprep.subr.mxu0 0.0
    %568 = vmatpush2.msra.mxu0 0.0
    %569 = vmatprep.subr.mxu0 0.0
    %570 = vmatpush2.msra.mxu0 0.0
    %571 = vmatprep.subr.mxu0 0.0
    %572 = vmatpush2.msra.mxu0 0.0
    %573 = vmatprep.subr.mxu0 0.0
    %574 = vmatpush2.msra.mxu0 0.0
    %575 = vmatprep.subr.mxu0 0.0
    %576 = vmatpush2.msra.mxu0 0.0
    %577 = vmatprep.subr.mxu0 0.0
    %578 = vmatpush2.msra.mxu0 0.0
    %579 = vmatprep.subr.mxu0 0.0
    %580 = vmatpush2.msra.mxu0 0.0
    %581 = vmatprep.subr.mxu0 0.0
    %582 = vmatpush2.msra.mxu0 0.0
    %583 = vmatprep.subr.mxu0 0.0
    %584 = vmatpush2.msra.mxu0 0.0
    %585 = vmatprep.mubr.f32.mxu0 0.0
    %586 = vmatmul.mubr.f32.gmra.mxu0 %v112
    %v587 = vpop.f32.mrf.mxu0
    %v588 = vadd.f32 0.0, %v587
    %v589 = vpop.f32.mrf.mxu0
    %v590 = vadd.f32 0.0, %v589
    %591 = vdwg.mxu0
    %v592 = vadd.f32 %v471, %v588
    %v593 = vadd.f32 %v472, %v590
    %v594 = vld [vmem:[#allocation8 + $0x200] sm:$0xff]
    %v595 = vld [vmem:[#allocation8 + $0x208] sm:$0xff]
    %v596 = vld [vmem:[#allocation8 + $0x210] sm:$0xff]
    %v597 = vld [vmem:[#allocation8 + $0x218] sm:$0xff]
    %v598 = vld [vmem:[#allocation8 + $0x220] sm:$0xff]
    %v599 = vld [vmem:[#allocation8 + $0x228] sm:$0xff]
    %v600 = vld [vmem:[#allocation8 + $0x230] sm:$0xff]
    %v601 = vld [vmem:[#allocation8 + $0x238] sm:$0xff]
    %v602 = vld [vmem:[#allocation8 + $0x240] sm:$0xff]
    %v603 = vld [vmem:[#allocation8 + $0x248] sm:$0xff]
    %v604 = vld [vmem:[#allocation8 + $0x250] sm:$0xff]
    %v605 = vld [vmem:[#allocation8 + $0x258] sm:$0xff]
    %v606 = vld [vmem:[#allocation8 + $0x260] sm:$0xff]
    %v607 = vld [vmem:[#allocation8 + $0x268] sm:$0xff]
    %v608 = vld [vmem:[#allocation8 + $0x270] sm:$0xff]
    %v609 = vld [vmem:[#allocation8 + $0x278] sm:$0xff]
    %v610 = vunpack.c.l.bf16 %v594
    %v611 = vunpack.c.h.bf16 %v594
    %v612 = vunpack.c.l.bf16 %v595
    %v613 = vunpack.c.h.bf16 %v595
    %v614 = vunpack.c.l.bf16 %v596
    %v615 = vunpack.c.h.bf16 %v596
    %v616 = vunpack.c.l.bf16 %v597
    %v617 = vunpack.c.h.bf16 %v597
    %v618 = vunpack.c.l.bf16 %v598
    %v619 = vunpack.c.h.bf16 %v598
    %v620 = vunpack.c.l.bf16 %v599
    %v621 = vunpack.c.h.bf16 %v599
    %v622 = vunpack.c.l.bf16 %v600
    %v623 = vunpack.c.h.bf16 %v600
    %v624 = vunpack.c.l.bf16 %v601
    %v625 = vunpack.c.h.bf16 %v601
    %v626 = vunpack.c.l.bf16 %v602
    %v627 = vunpack.c.h.bf16 %v602
    %v628 = vunpack.c.l.bf16 %v603
    %v629 = vunpack.c.h.bf16 %v603
    %v630 = vunpack.c.l.bf16 %v604
    %v631 = vunpack.c.h.bf16 %v604
    %v632 = vunpack.c.l.bf16 %v605
    %v633 = vunpack.c.h.bf16 %v605
    %v634 = vunpack.c.l.bf16 %v606
    %v635 = vunpack.c.h.bf16 %v606
    %v636 = vunpack.c.l.bf16 %v607
    %v637 = vunpack.c.h.bf16 %v607
    %v638 = vunpack.c.l.bf16 %v608
    %v639 = vunpack.c.h.bf16 %v608
    %v640 = vunpack.c.l.bf16 %v609
    %v641 = vunpack.c.h.bf16 %v609
    %642 = vmatprep.subr.mxu0 %v641
    %643 = vmatpush1.msra.mxu0 %v640
    %644 = vmatprep.subr.mxu0 %v639
    %645 = vmatpush1.msra.mxu0 %v638
    %646 = vmatprep.subr.mxu0 %v637
    %647 = vmatpush1.msra.mxu0 %v636
    %648 = vmatprep.subr.mxu0 %v635
    %649 = vmatpush1.msra.mxu0 %v634
    %650 = vmatprep.subr.mxu0 %v633
    %651 = vmatpush1.msra.mxu0 %v632
    %652 = vmatprep.subr.mxu0 %v631
    %653 = vmatpush1.msra.mxu0 %v630
    %654 = vmatprep.subr.mxu0 %v629
    %655 = vmatpush1.msra.mxu0 %v628
    %656 = vmatprep.subr.mxu0 %v627
    %657 = vmatpush1.msra.mxu0 %v626
    %658 = vmatprep.subr.mxu0 %v625
    %659 = vmatpush1.msra.mxu0 %v624
    %660 = vmatprep.subr.mxu0 %v623
    %661 = vmatpush1.msra.mxu0 %v622
    %662 = vmatprep.subr.mxu0 %v621
    %663 = vmatpush1.msra.mxu0 %v620
    %664 = vmatprep.subr.mxu0 %v619
    %665 = vmatpush1.msra.mxu0 %v618
    %666 = vmatprep.subr.mxu0 %v617
    %667 = vmatpush1.msra.mxu0 %v616
    %668 = vmatprep.subr.mxu0 %v615
    %669 = vmatpush1.msra.mxu0 %v614
    %670 = vmatprep.subr.mxu0 %v613
    %671 = vmatpush1.msra.mxu0 %v612
    %672 = vmatprep.subr.mxu0 %v611
    %673 = vmatpush1.msra.mxu0 %v610
    %674 = vmatprep.subr.mxu0 0.0
    %675 = vmatpush2.msra.mxu0 0.0
    %676 = vmatprep.subr.mxu0 0.0
    %677 = vmatpush2.msra.mxu0 0.0
    %678 = vmatprep.subr.mxu0 0.0
    %679 = vmatpush2.msra.mxu0 0.0
    %680 = vmatprep.subr.mxu0 0.0
    %681 = vmatpush2.msra.mxu0 0.0
    %682 = vmatprep.subr.mxu0 0.0
    %683 = vmatpush2.msra.mxu0 0.0
    %684 = vmatprep.subr.mxu0 0.0
    %685 = vmatpush2.msra.mxu0 0.0
    %686 = vmatprep.subr.mxu0 0.0
    %687 = vmatpush2.msra.mxu0 0.0
    %688 = vmatprep.subr.mxu0 0.0
    %689 = vmatpush2.msra.mxu0 0.0
    %690 = vmatprep.subr.mxu0 0.0
    %691 = vmatpush2.msra.mxu0 0.0
    %692 = vmatprep.subr.mxu0 0.0
    %693 = vmatpush2.msra.mxu0 0.0
    %694 = vmatprep.subr.mxu0 0.0
    %695 = vmatpush2.msra.mxu0 0.0
    %696 = vmatprep.subr.mxu0 0.0
    %697 = vmatpush2.msra.mxu0 0.0
    %698 = vmatprep.subr.mxu0 0.0
    %699 = vmatpush2.msra.mxu0 0.0
    %700 = vmatprep.subr.mxu0 0.0
    %701 = vmatpush2.msra.mxu0 0.0
    %702 = vmatprep.subr.mxu0 0.0
    %703 = vmatpush2.msra.mxu0 0.0
    %704 = vmatprep.subr.mxu0 0.0
    %705 = vmatpush2.msra.mxu0 0.0
    %706 = vmatprep.mubr.f32.mxu0 0.0
    %707 = vmatmul.mubr.f32.gmra.mxu0 %v113
    %v708 = vpop.f32.mrf.mxu0
    %v709 = vadd.f32 0.0, %v708
    %v710 = vpop.f32.mrf.mxu0
    %v711 = vadd.f32 0.0, %v710
    %712 = vdwg.mxu0
    %v713 = vadd.f32 %v592, %v709
    %v714 = vadd.f32 %v593, %v711
    %v715 = vld [vmem:[%s3] sm:$0x3]
    %v717 = vlaneseq
    %v718 = vshrl.u32 %v717, 7
    %v719 = vsub.s32 0, %v718
    %v720 = vrot.slane %v715, %v719
    %v721 = vlaneseq
    %v722 = vshrl.u32 %v721, 7
    %v723 = vsub.s32 1, %v722
    %v724 = vrot.slane %v715, %v723
    %v727 = vadd.f32 %v713, %v720
    %v728 = vadd.f32 %v714, %v724
    %v729 = vmax.f32 %v727, 0.0
    %v730 = vmax.f32 %v728, 0.0
    %v731 = vld [vmem:[#allocation9] sm:$0xf]
    %v732 = vld [vmem:[#allocation9 + $0x4] sm:$0xf]
    %v733 = vld [vmem:[#allocation9 + $0x8] sm:$0xf]
    %v734 = vld [vmem:[#allocation9 + $0xc] sm:$0xf]
    %v735 = vld [vmem:[#allocation9 + $0x10] sm:$0xf]
    %v736 = vld [vmem:[#allocation9 + $0x14] sm:$0xf]
    %v737 = vld [vmem:[#allocation9 + $0x18] sm:$0xf]
    %v738 = vld [vmem:[#allocation9 + $0x1c] sm:$0xf]
    %v739 = vld [vmem:[#allocation9 + $0x20] sm:$0xf]
    %v740 = vld [vmem:[#allocation9 + $0x24] sm:$0xf]
    %v741 = vld [vmem:[#allocation9 + $0x28] sm:$0xf]
    %v742 = vld [vmem:[#allocation9 + $0x2c] sm:$0xf]
    %v743 = vld [vmem:[#allocation9 + $0x30] sm:$0xf]
    %v744 = vld [vmem:[#allocation9 + $0x34] sm:$0xf]
    %v745 = vld [vmem:[#allocation9 + $0x38] sm:$0xf]
    %v746 = vld [vmem:[#allocation9 + $0x3c] sm:$0xf]
    %v747 = vunpack.c.l.bf16 %v731
    %v748 = vunpack.c.l.bf16 %v732
    %v749 = vunpack.c.l.bf16 %v733
    %v750 = vunpack.c.l.bf16 %v734
    %v751 = vunpack.c.l.bf16 %v735
    %v752 = vunpack.c.l.bf16 %v736
    %v753 = vunpack.c.l.bf16 %v737
    %v754 = vunpack.c.l.bf16 %v738
    %v755 = vunpack.c.l.bf16 %v739
    %v756 = vunpack.c.l.bf16 %v740
    %v757 = vunpack.c.l.bf16 %v741
    %v758 = vunpack.c.l.bf16 %v742
    %v759 = vunpack.c.l.bf16 %v743
    %v760 = vunpack.c.l.bf16 %v744
    %v761 = vunpack.c.l.bf16 %v745
    %v762 = vunpack.c.l.bf16 %v746
    %v763 = vld [vmem:[%s5] sm:$0x1]
    %v765 = vlaneseq
    %v766 = vshrl.u32 %v765, 7
    %v767 = vsub.s32 0, %v766
    %v768 = vrot.slane %v763, %v767
    %770 = vmatprep.subr.mxu0 0.0
    %771 = vmatpush1.msra.mxu0 %v762
    %772 = vmatprep.subr.mxu0 0.0
    %773 = vmatpush1.msra.mxu0 %v761
    %774 = vmatprep.subr.mxu0 0.0
    %775 = vmatpush1.msra.mxu0 %v760
    %776 = vmatprep.subr.mxu0 0.0
    %777 = vmatpush1.msra.mxu0 %v759
    %778 = vmatprep.subr.mxu0 0.0
    %779 = vmatpush1.msra.mxu0 %v758
    %780 = vmatprep.subr.mxu0 0.0
    %781 = vmatpush1.msra.mxu0 %v757
    %782 = vmatprep.subr.mxu0 0.0
    %783 = vmatpush1.msra.mxu0 %v756
    %784 = vmatprep.subr.mxu0 0.0
    %785 = vmatpush1.msra.mxu0 %v755
    %786 = vmatprep.subr.mxu0 0.0
    %787 = vmatpush1.msra.mxu0 %v754
    %788 = vmatprep.subr.mxu0 0.0
    %789 = vmatpush1.msra.mxu0 %v753
    %790 = vmatprep.subr.mxu0 0.0
    %791 = vmatpush1.msra.mxu0 %v752
    %792 = vmatprep.subr.mxu0 0.0
    %793 = vmatpush1.msra.mxu0 %v751
    %794 = vmatprep.subr.mxu0 0.0
    %795 = vmatpush1.msra.mxu0 %v750
    %796 = vmatprep.subr.mxu0 0.0
    %797 = vmatpush1.msra.mxu0 %v749
    %798 = vmatprep.subr.mxu0 0.0
    %799 = vmatpush1.msra.mxu0 %v748
    %800 = vmatprep.subr.mxu0 0.0
    %801 = vmatpush1.msra.mxu0 %v747
    %802 = vmatprep.subr.mxu0 0.0
    %803 = vmatpush2.msra.mxu0 0.0
    %804 = vmatprep.subr.mxu0 0.0
    %805 = vmatpush2.msra.mxu0 0.0
    %806 = vmatprep.subr.mxu0 0.0
    %807 = vmatpush2.msra.mxu0 0.0
    %808 = vmatprep.subr.mxu0 0.0
    %809 = vmatpush2.msra.mxu0 0.0
    %810 = vmatprep.subr.mxu0 0.0
    %811 = vmatpush2.msra.mxu0 0.0
    %812 = vmatprep.subr.mxu0 0.0
    %813 = vmatpush2.msra.mxu0 0.0
    %814 = vmatprep.subr.mxu0 0.0
    %815 = vmatpush2.msra.mxu0 0.0
    %816 = vmatprep.subr.mxu0 0.0
    %817 = vmatpush2.msra.mxu0 0.0
    %818 = vmatprep.subr.mxu0 0.0
    %819 = vmatpush2.msra.mxu0 0.0
    %820 = vmatprep.subr.mxu0 0.0
    %821 = vmatpush2.msra.mxu0 0.0
    %822 = vmatprep.subr.mxu0 0.0
    %823 = vmatpush2.msra.mxu0 0.0
    %824 = vmatprep.subr.mxu0 0.0
    %825 = vmatpush2.msra.mxu0 0.0
    %826 = vmatprep.subr.mxu0 0.0
    %827 = vmatpush2.msra.mxu0 0.0
    %828 = vmatprep.subr.mxu0 0.0
    %829 = vmatpush2.msra.mxu0 0.0
    %830 = vmatprep.subr.mxu0 0.0
    %831 = vmatpush2.msra.mxu0 0.0
    %832 = vmatprep.subr.mxu0 0.0
    %833 = vmatpush2.msra.mxu0 0.0
    %834 = vmatprep.mubr.f32.mxu0 0.0
    %835 = vmatmul.mubr.f32.gmra.mxu0 %v729
    %v836 = vpop.f32.mrf.mxu0
    %v837 = vadd.f32 %v768, %v836
    %v838 = vpop.f32.mrf.mxu0
    %839 = vdwg.mxu0
    %v840 = vmax.f32 %v837, 0.0
    %v841 = vld [vmem:[#allocation11] sm:$0xf]
    %v842 = vld [vmem:[#allocation11 + $0x4] sm:$0xf]
    %v843 = vld [vmem:[#allocation11 + $0x8] sm:$0xf]
    %v844 = vld [vmem:[#allocation11 + $0xc] sm:$0xf]
    %v845 = vld [vmem:[#allocation11 + $0x10] sm:$0xf]
    %v846 = vld [vmem:[#allocation11 + $0x14] sm:$0xf]
    %v847 = vld [vmem:[#allocation11 + $0x18] sm:$0xf]
    %v848 = vld [vmem:[#allocation11 + $0x1c] sm:$0xf]
    %v849 = vld [vmem:[#allocation11 + $0x20] sm:$0xf]
    %v850 = vld [vmem:[#allocation11 + $0x24] sm:$0xf]
    %v851 = vld [vmem:[#allocation11 + $0x28] sm:$0xf]
    %v852 = vld [vmem:[#allocation11 + $0x2c] sm:$0xf]
    %v853 = vld [vmem:[#allocation11 + $0x30] sm:$0xf]
    %v854 = vld [vmem:[#allocation11 + $0x34] sm:$0xf]
    %v855 = vld [vmem:[#allocation11 + $0x38] sm:$0xf]
    %v856 = vld [vmem:[#allocation11 + $0x3c] sm:$0xf]
    %v857 = vunpack.c.l.bf16 %v841
    %v858 = vunpack.c.l.bf16 %v842
    %v859 = vunpack.c.l.bf16 %v843
    %v860 = vunpack.c.l.bf16 %v844
    %v861 = vunpack.c.l.bf16 %v845
    %v862 = vunpack.c.l.bf16 %v846
    %v863 = vunpack.c.l.bf16 %v847
    %v864 = vunpack.c.l.bf16 %v848
    %v865 = vunpack.c.l.bf16 %v849
    %v866 = vunpack.c.l.bf16 %v850
    %v867 = vunpack.c.l.bf16 %v851
    %v868 = vunpack.c.l.bf16 %v852
    %v869 = vunpack.c.l.bf16 %v853
    %v870 = vunpack.c.l.bf16 %v854
    %v871 = vunpack.c.l.bf16 %v855
    %v872 = vunpack.c.l.bf16 %v856
    %v873 = vld [vmem:[%s7] sm:$0x1]
    %v875 = vlaneseq
    %v876 = vshrl.u32 %v875, 7
    %v877 = vsub.s32 0, %v876
    %v878 = vrot.slane %v873, %v877
    %880 = vmatprep.subr.mxu0 0.0
    %881 = vmatpush1.msra.mxu0 %v872
    %882 = vmatprep.subr.mxu0 0.0
    %883 = vmatpush1.msra.mxu0 %v871
    %884 = vmatprep.subr.mxu0 0.0
    %885 = vmatpush1.msra.mxu0 %v870
    %886 = vmatprep.subr.mxu0 0.0
    %887 = vmatpush1.msra.mxu0 %v869
    %888 = vmatprep.subr.mxu0 0.0
    %889 = vmatpush1.msra.mxu0 %v868
    %890 = vmatprep.subr.mxu0 0.0
    %891 = vmatpush1.msra.mxu0 %v867
    %892 = vmatprep.subr.mxu0 0.0
    %893 = vmatpush1.msra.mxu0 %v866
    %894 = vmatprep.subr.mxu0 0.0
    %895 = vmatpush1.msra.mxu0 %v865
    %896 = vmatprep.subr.mxu0 0.0
    %897 = vmatpush1.msra.mxu0 %v864
    %898 = vmatprep.subr.mxu0 0.0
    %899 = vmatpush1.msra.mxu0 %v863
    %900 = vmatprep.subr.mxu0 0.0
    %901 = vmatpush1.msra.mxu0 %v862
    %902 = vmatprep.subr.mxu0 0.0
    %903 = vmatpush1.msra.mxu0 %v861
    %904 = vmatprep.subr.mxu0 0.0
    %905 = vmatpush1.msra.mxu0 %v860
    %906 = vmatprep.subr.mxu0 0.0
    %907 = vmatpush1.msra.mxu0 %v859
    %908 = vmatprep.subr.mxu0 0.0
    %909 = vmatpush1.msra.mxu0 %v858
    %910 = vmatprep.subr.mxu0 0.0
    %911 = vmatpush1.msra.mxu0 %v857
    %912 = vmatprep.subr.mxu0 0.0
    %913 = vmatpush2.msra.mxu0 0.0
    %914 = vmatprep.subr.mxu0 0.0
    %915 = vmatpush2.msra.mxu0 0.0
    %916 = vmatprep.subr.mxu0 0.0
    %917 = vmatpush2.msra.mxu0 0.0
    %918 = vmatprep.subr.mxu0 0.0
    %919 = vmatpush2.msra.mxu0 0.0
    %920 = vmatprep.subr.mxu0 0.0
    %921 = vmatpush2.msra.mxu0 0.0
    %922 = vmatprep.subr.mxu0 0.0
    %923 = vmatpush2.msra.mxu0 0.0
    %924 = vmatprep.subr.mxu0 0.0
    %925 = vmatpush2.msra.mxu0 0.0
    %926 = vmatprep.subr.mxu0 0.0
    %927 = vmatpush2.msra.mxu0 0.0
    %928 = vmatprep.subr.mxu0 0.0
    %929 = vmatpush2.msra.mxu0 0.0
    %930 = vmatprep.subr.mxu0 0.0
    %931 = vmatpush2.msra.mxu0 0.0
    %932 = vmatprep.subr.mxu0 0.0
    %933 = vmatpush2.msra.mxu0 0.0
    %934 = vmatprep.subr.mxu0 0.0
    %935 = vmatpush2.msra.mxu0 0.0
    %936 = vmatprep.subr.mxu0 0.0
    %937 = vmatpush2.msra.mxu0 0.0
    %938 = vmatprep.subr.mxu0 0.0
    %939 = vmatpush2.msra.mxu0 0.0
    %940 = vmatprep.subr.mxu0 0.0
    %941 = vmatpush2.msra.mxu0 0.0
    %942 = vmatprep.subr.mxu0 0.0
    %943 = vmatpush2.msra.mxu0 0.0
    %944 = vmatprep.mubr.f32.mxu0 0.0
    %945 = vmatmul.mubr.f32.gmra.mxu0 %v730
    %v946 = vpop.f32.mrf.mxu0
    %v947 = vadd.f32 %v878, %v946
    %v948 = vpop.f32.mrf.mxu0
    %949 = vdwg.mxu0
    %v950 = vmax.f32 %v947, 0.0
    %v951 = vld [vmem:[%s8] sm:$0x1]
    %v952 = vunpack.c.l.bf16 %v951
    %v953 = vlaneseq
    %v954 = vshrl.u32 %v953, 7
    %v955 = vsub.s32 0, %v954
    %v956 = vrot.slane %v952, %v955
    %v957 = vmul.f32 %v840, %v956
    %958 = vadd.xlane.f32.xlu0 %v957
    %v959 = vpop.xlane.xlu0 %958
    %v960 = vld [vmem:[#allocation2] sm:$0x1]
    %v962 = vlaneseq
    %v963 = vshrl.u32 %v962, 7
    %v964 = vsub.s32 0, %v963
    %v965 = vrot.slane %v960, %v964
    %v967 = vadd.f32 %v959, %v965
    %v968 = vld [vmem:[%s10] sm:$0x1]
    %v969 = vunpack.c.l.bf16 %v968
    %v970 = vlaneseq
    %v971 = vshrl.u32 %v970, 7
    %v972 = vsub.s32 0, %v971
    %v973 = vrot.slane %v969, %v972
    %v974 = vmul.f32 %v950, %v973
    %975 = vadd.xlane.f32.xlu0 %v974
    %v976 = vpop.xlane.xlu0 %975
    %v977 = vld [vmem:[#allocation3] sm:$0x1]
    %v979 = vlaneseq
    %v980 = vshrl.u32 %v979, 7
    %v981 = vsub.s32 0, %v980
    %v982 = vrot.slane %v977, %v981
    %v984 = vadd.f32 %v976, %v982
    %v985 = vxor.u32 %v967, 2147483648
    %v986 = vmul.f32 %v985, 1.442695
    %v987 = vpow.pop %v986
    %v988 = vadd.f32 %v987, 1.0
    %v989 = vrcp.pop %v988
    %v990 = vmul.f32 1.0, %v989
    %v991 = vxor.u32 %v984, 2147483648
    %v992 = vmul.f32 %v991, 1.442695
    %v993 = vpow.pop %v992
    %v994 = vadd.f32 %v993, 1.0
    %v995 = vrcp.pop %v994
    %v996 = vmul.f32 1.0, %v995
    %v997 = vadd.f32 %v990, %v996
    %v998 = vmul.f32 %v997, 0.5
    %vm999 = vcmask 7168
    %1000 = vst.msk [vmem:[%s12] sm:$0xff] %vm999, %v998
    // Predicated region
    $region70: #{mlp_discriminator.1} parent=1 // pred_check
      _
    $region71: #{mlp_discriminator.1} parent=1 // pred_check_branch
      %1002 = sbr.rel (0) target = $region73
    $region72: #{mlp_discriminator.1} parent=1 // pred_region
      _
    $region73: #{mlp_discriminator.1} parent=1 // pred_fallthru
      _
    // Predicated region
    $region74: #{mlp_discriminator.1} parent=1 // pred_check
      _
    $region75: #{mlp_discriminator.1} parent=1 // pred_check_branch
      %1004 = sbr.rel (0) target = $region77
    $region76: #{mlp_discriminator.1} parent=1 // pred_region
      _
    $region77: #{mlp_discriminator.1} parent=1 // pred_fallthru
      _
    %1005 = vsyncpa [#allocation5], 1
    %1006 = vsyncpa [#allocation7], 1
    %1007 = vsyncpa [#allocation10], 1

</llo_original>
